<compile_context>
chip_gen: v7x
topology: tpu7x:2x2x1
jax: 0.10.0
libtpu: 0.0.40
codegen_flags: <defaults>
</compile_context>

<pallas_src>
import numpy as np
import jax
import jax.numpy as jnp
from jax.experimental import pallas as pl
from jax.experimental.pallas import tpu as pltpu


def _round_up(x, m):
    return (x + m - 1) // m * m


# --------------------------------------------------------------------------
# Kernel: assemble augmented tile in VMEM registers, one MXU matmul,
# fused multiply + lane reduction, runtime SMEM scale.
# --------------------------------------------------------------------------
def _make_energy_kernel(has_hidden):
    def kernel(scale_ref, *refs):
        if has_hidden:
            v_ref, h_ref, a_ref, o_ref = refs
        else:
            v_ref, a_ref, o_ref = refs
        cdt = a_ref.dtype                       # MXU operand dtype (bf16/f32)
        tb = v_ref.shape[0]
        dp = a_ref.shape[0]

        parts = [v_ref[...].astype(cdt)]        # (tb, V)
        d = v_ref.shape[1]
        if has_hidden:
            parts.append(h_ref[...].astype(cdt))  # (tb, H)
            d += h_ref.shape[1]

        # Tail = [1, 0, 0, ...]: the ones column feeds the bias column of A,
        # the rest is the (VMEM-only) zero padding up to Dp.
        tail_w = dp - d                         # >= 1 by construction
        col = jax.lax.broadcasted_iota(jnp.int32, (tb, tail_w), 1)
        parts.append((col == 0).astype(cdt))

        x = jnp.concatenate(parts, axis=-1)     # (tb, dp) augmented state
        y = jnp.dot(x, a_ref[...], preferred_element_type=jnp.float32)
        # Promotion of x fused into the multiply (no explicit f32 temp).
        e = jnp.sum(y * x, axis=-1, keepdims=True)      # (tb, 1) f32
        o_ref[...] = (-scale_ref[0]) * e

    return kernel


# --------------------------------------------------------------------------
# Parameter-matrix assembly (call once per parameter update, reuse per call).
# --------------------------------------------------------------------------
def _triu_to_dense(flat, n):
    """Dense strictly-upper-triangular (n, n) from a flat triu(k=1) vector,
    built with a static gather + mask (no O(n^2) scatter)."""
    if n < 2 or flat.shape[0] == 0:
        return jnp.zeros((n, n), jnp.float32)
    iu, ju = np.triu_indices(n, 1)
    idx = np.zeros((n, n), np.int32)
    idx[iu, ju] = np.arange(iu.size, dtype=np.int32)
    mask = np.zeros((n, n), bool)
    mask[iu, ju] = True
    return jnp.where(mask, jnp.take(flat.astype(jnp.float32), idx), 0.0)


def build_energy_matrix(b, c, W, vv, hh, *, dtype=jnp.bfloat16):
    """Fused parameter matrix A, padded to (Dp, Dp), Dp = round_up(V+H+1, 128).
    Only this once-loaded, VMEM-resident matrix carries padding; the streamed
    state tensors are unpadded."""
    V, H = b.shape[0], c.shape[0]
    D = V + H
    dp = _round_up(D + 1, 128)

    A = jnp.zeros((dp, dp), jnp.float32)
    A = A.at[:V, :V].set(_triu_to_dense(vv, V))          # vis-vis couplings
    A = A.at[:V, D].set(b.astype(jnp.float32))           # visible biases
    if H > 0:
        A = A.at[:V, V:D].set(W.astype(jnp.float32).T)   # vis-hid couplings
        A = A.at[V:D, V:D].set(_triu_to_dense(hh, H))    # hid-hid couplings
        A = A.at[V:D, D].set(c.astype(jnp.float32))      # hidden biases
    return A.astype(dtype)


# --------------------------------------------------------------------------
# VMEM budgeting / tile selection (per TPU generation)
# --------------------------------------------------------------------------
def _vmem_budget_bytes():
    cap = 64 << 20            # smallest per-core VMEM across v5e/v6e/v7x
    try:
        cap = int(pltpu.get_tpu_info().vmem_capacity_bytes)
    except Exception:
        pass
    return (cap * 3) // 4     # leave headroom for compiler scratch


def _vmem_need(tile_b, V, H, dp, in_itemsize, a_itemsize):
    return (dp * dp * a_itemsize                    # resident A (Buffered(1))
            + 2 * tile_b * (V + H) * in_itemsize    # double-buffered v/h tiles
            + tile_b * dp * a_itemsize              # augmented x (kernel temp)
            + tile_b * dp * 4                       # f32 matmul result
            + 2 * tile_b * 4)                       # double-buffered out tile


def _pick_tile_b(B, V, H, dp, in_itemsize, a_itemsize, budget_bytes):
    b8 = _round_up(max(int(B), 1), 8)
    tile = 8
    # Largest sublane tile that fits the budget; no divisibility requirement.
    for cand in (4096, 2048, 1024, 512, 256, 128, 64, 32, 16, 8):
        if _vmem_need(cand, V, H, dp, in_itemsize, a_itemsize) <= budget_bytes:
            tile = cand
            break
    tile = _round_up(min(tile, b8), 8)      # don't pad far beyond the batch
    # v7x megacore: prefer >= 2 batch tiles so ("parallel",) can use both TCs.
    while tile > 8 and pl.cdiv(B, tile) < 2:
        tile = _round_up(tile // 2, 8)
    return tile


# --------------------------------------------------------------------------
# Wrapper
# --------------------------------------------------------------------------
def boltzmann_energy_from_matrix(visible, hidden, a_mat, *, scale=1.0,
                                 tile_b=None):
    """Energy of a batch of states given the prebuilt fused matrix A."""
    B, V = visible.shape
    has_hidden = (hidden is not None) and hidden.shape[-1] > 0
    H = hidden.shape[-1] if has_hidden else 0
    dp = a_mat.shape[0]
    in_itemsize = visible.dtype.itemsize
    a_itemsize = a_mat.dtype.itemsize

    budget = _vmem_budget_bytes()
    if tile_b is None:
        tile_b = _pick_tile_b(B, V, H, dp, in_itemsize, a_itemsize, budget)
    else:
        tile_b = max(8, _round_up(int(tile_b), 8))
    need = _vmem_need(tile_b, V, H, dp, in_itemsize, a_itemsize)
    vmem_limit = int(max(32 << 20, min(need + (16 << 20), budget)))

    grid = (pl.cdiv(B, tile_b),)
    scale_arr = jnp.asarray(scale, jnp.float32).reshape((1,))
    kernel = _make_energy_kernel(has_hidden)

    base_in_specs = [
        pl.BlockSpec(memory_space=pltpu.MemorySpace.SMEM),       # scale scalar
        pl.BlockSpec((tile_b, V), lambda i: (i, 0)),             # visible tiles
    ]
    if has_hidden:
        base_in_specs.append(pl.BlockSpec((tile_b, H), lambda i: (i, 0)))
    args = (scale_arr, visible) + ((hidden,) if has_hidden else ()) + (a_mat,)

    def run(single_buffer_params):
        spec_kwargs = (dict(pipeline_mode=pl.Buffered(1))
                       if single_buffer_params else {})
        a_spec = pl.BlockSpec((dp, dp), lambda i: (0, 0), **spec_kwargs)
        call = pl.pallas_call(
            kernel,
            out_shape=jax.ShapeDtypeStruct((B, 1), jnp.float32),
            grid=grid,
            in_specs=base_in_specs + [a_spec],
            out_specs=pl.BlockSpec((tile_b, 1), lambda i: (i, 0)),
            compiler_params=pltpu.CompilerParams(
                dimension_semantics=("parallel",),
                vmem_limit_bytes=vmem_limit,
            ),
        )
        return call(*args)

    try:
        out = run(True)        # single-buffered resident parameter matrix
    except Exception:          # pragma: no cover - fallback if Buffered(1) rejected
        out = run(False)
    return out[:B, 0]


def boltzmann_energy(visible, hidden, b, c, W, vv, hh, scale=1.0,
                     dtype=jnp.bfloat16):
    """Convenience path: builds A then evaluates. For repeated energy() calls
    with fixed parameters, prebuild A with build_energy_matrix()."""
    a_mat = build_energy_matrix(b, c, W, vv, hh, dtype=dtype)
    return boltzmann_energy_from_matrix(visible, hidden, a_mat, scale=scale)


# --------------------------------------------------------------------------
# Plain-JAX mirror of the PyTorch BoltzmannMachine.energy
# --------------------------------------------------------------------------
def _reference_energy(visible, hidden, b, c, W, vv, hh, scale=1.0):
    V, H = b.shape[0], c.shape[0]
    linear = visible @ b + hidden @ c
    quadratic = jnp.sum((visible @ W.T) * hidden, axis=-1)
    vi, vj = np.triu_indices(V, 1)
    hi, hj = np.triu_indices(H, 1)
    vis_vis = jnp.sum(visible[:, vi] * visible[:, vj] * vv, axis=-1)
    hid_hid = jnp.sum(hidden[:, hi] * hidden[:, hj] * hh, axis=-1)
    return -scale * (linear + quadratic + vis_vis + hid_hid)


if __name__ == "__main__":
    # Small shapes consistent with the module: V visible units, H hidden units.
    B, V, H = 8, 32, 16
    lin_range = (-0.1, 0.1)
    quad_range = (-0.1, 0.1)

    key = jax.random.PRNGKey(0)
    kb, kc, kvv, khh, kW, kv, kh = jax.random.split(key, 7)

    # Deterministic parameter init matching BoltzmannMachine.__init__ shapes.
    b = jax.random.uniform(kb, (V,), jnp.float32, *lin_range)
    c = jax.random.uniform(kc, (H,), jnp.float32, *lin_range)
    vv = jax.random.uniform(kvv, (V * (V - 1) // 2,), jnp.float32, *quad_range)
    hh = jax.random.uniform(khh, (H * (H - 1) // 2,), jnp.float32, *quad_range)
    W = jax.random.uniform(kW, (H, V), jnp.float32, *quad_range)

    # Binary (dimod.BINARY) visible / hidden states.
    visible = jax.random.bernoulli(kv, 0.5, (B, V)).astype(jnp.float32)
    hidden = jax.random.bernoulli(kh, 0.5, (B, H)).astype(jnp.float32)

    ref = _reference_energy(visible, hidden, b, c, W, vv, hh, scale=1.0)

    # 1) f32 parameter matrix: check of the fused quadratic-form formulation.
    a_f32 = build_energy_matrix(b, c, W, vv, hh, dtype=jnp.float32)
    e_f32 = boltzmann_energy_from_matrix(visible, hidden, a_f32, scale=1.0)
    e_f32 = jax.block_until_ready(e_f32)
    np.testing.assert_allclose(np.asarray(e_f32), np.asarray(ref),
                               rtol=5e-3, atol=5e-3)

    # 1b) Runtime (SMEM) scale: same kernel, different beta, no recompile.
    e_half = boltzmann_energy_from_matrix(visible, hidden, a_f32, scale=0.5)
    e_half = jax.block_until_ready(e_half)
    np.testing.assert_allclose(np.asarray(e_half), 0.5 * np.asarray(ref),
                               rtol=5e-3, atol=5e-3)

    # 2) Default bf16-MXU path (f32 accumulate); tolerance covers bf16
    #    rounding of ~0.1-magnitude couplings.
    a_bf16 = build_energy_matrix(b, c, W, vv, hh)       # bf16 (default)
    e_bf16 = boltzmann_energy_from_matrix(visible, hidden, a_bf16, scale=1.0)
    e_bf16 = jax.block_until_ready(e_bf16)
    np.testing.assert_allclose(np.asarray(e_bf16), np.asarray(ref),
                               rtol=3e-2, atol=3e-2)

    print("KERNEL_OK")
</pallas_src>

<mosaic_0001>
module attributes {stable_mosaic.version = 11 : i64} {
  func.func @kernel(%arg0: i32, %arg1: memref<1xf32, #tpu.memory_space<smem>>, %arg2: memref<8x32xf32, #tpu.memory_space<vmem>>, %arg3: memref<8x16xf32, #tpu.memory_space<vmem>>, %arg4: memref<128x128xf32, #tpu.memory_space<vmem>>, %arg5: memref<8x1xf32, #tpu.memory_space<vmem>>) attributes {dimension_semantics = [#tpu.dimension_semantics<parallel>], iteration_bounds = array<i64: 1>, scalar_prefetch = 0 : i64, scratch_operands = 0 : i64, tpu.core_type = #tpu.core_type<tc>, window_params = [{transform_indices = @transform_0, window_bounds = array<i64: 1>}, {transform_indices = @transform_1, window_bounds = array<i64: 8, 32>}, {transform_indices = @transform_2, window_bounds = array<i64: 8, 16>}, {pipeline_mode = #tpu.pipeline_mode<synchronous>, transform_indices = @transform_3, window_bounds = array<i64: 128, 128>}, {transform_indices = @transform_4, window_bounds = array<i64: 8, 1>}]} {
    %c0 = arith.constant 0 : index
    %c0_0 = arith.constant 0 : index
    %0 = vector.load %arg2[%c0, %c0_0] : memref<8x32xf32, #tpu.memory_space<vmem>>, vector<8x32xf32>
    %c0_1 = arith.constant 0 : index
    %c0_2 = arith.constant 0 : index
    %1 = vector.load %arg3[%c0_1, %c0_2] : memref<8x16xf32, #tpu.memory_space<vmem>>, vector<8x16xf32>
    %2 = tpu.iota {dimensions = array<i32: 1>} : vector<8x80xi32>
    %c0_i32 = arith.constant 0 : i32
    %3 = vector.broadcast %c0_i32 : i32 to vector<8x80xi32>
    %4 = arith.cmpi eq, %2, %3 : vector<8x80xi32>
    %5 = arith.extui %4 : vector<8x80xi1> to vector<8x80xi32>
    %6 = arith.sitofp %5 : vector<8x80xi32> to vector<8x80xf32>
    %7 = tpu.concatenate %0, %1, %6 in 1 : vector<8x32xf32>, vector<8x16xf32>, vector<8x80xf32> -> vector<8x128xf32>
    %c0_3 = arith.constant 0 : index
    %c0_4 = arith.constant 0 : index
    %8 = vector.load %arg4[%c0_3, %c0_4] : memref<128x128xf32, #tpu.memory_space<vmem>>, vector<128x128xf32>
    %cst = arith.constant dense<0.000000e+00> : vector<8x128xf32>
    %9 = tpu.matmul %7, %8, %cst {dimension_numbers = #tpu.dot_dimension_numbers<[1], [0], [0], [1], [0, 0, 1, 1], [], []>} : vector<8x128xf32>, vector<128x128xf32>, vector<8x128xf32> -> vector<8x128xf32>
    %10 = arith.mulf %9, %7 : vector<8x128xf32>
    %cst_5 = arith.constant dense<0.000000e+00> : vector<8xf32>
    %11 = vector.multi_reduction <add>, %10, %cst_5 [1] : vector<8x128xf32> to vector<8xf32>
    %12 = vector.shape_cast %11 : vector<8xf32> to vector<8x1xf32>
    %c0_6 = arith.constant 0 : index
    %13 = memref.load %arg1[%c0_6] : memref<1xf32, #tpu.memory_space<smem>>
    %cst_7 = arith.constant 0.000000e+00 : f32
    %14 = arith.subf %cst_7, %13 : f32
    %15 = vector.broadcast %14 : f32 to vector<8x1xf32>
    %16 = arith.mulf %15, %12 : vector<8x1xf32>
    %c0_8 = arith.constant 0 : index
    %c0_9 = arith.constant 0 : index
    %17 = vector.load %arg5[%c0_8, %c0_9] : memref<8x1xf32, #tpu.memory_space<vmem>>, vector<8x1xf32>
    tpu.vector_store %arg5[%c0_8, %c0_9], %16 {strides = array<i32>} : memref<8x1xf32, #tpu.memory_space<vmem>>, vector<8x1xf32>,
    return
  }
  func.func @transform_0(%arg0: i32) -> i32 {
    %c0_i32 = arith.constant 0 : i32
    %c0_i32_0 = arith.constant 0 : i32
    return %c0_i32 : i32
  }
  func.func @transform_1(%arg0: i32) -> (i32, i32) {
    %c0_i32 = arith.constant 0 : i32
    %c0_i32_0 = arith.constant 0 : i32
    return %arg0, %c0_i32 : i32, i32
  }
  func.func @transform_2(%arg0: i32) -> (i32, i32) {
    %c0_i32 = arith.constant 0 : i32
    %c0_i32_0 = arith.constant 0 : i32
    return %arg0, %c0_i32 : i32, i32
  }
  func.func @transform_3(%arg0: i32) -> (i32, i32) {
    %c0_i32 = arith.constant 0 : i32
    %c0_i32_0 = arith.constant 0 : i32
    %c0_i32_1 = arith.constant 0 : i32
    return %c0_i32, %c0_i32_0 : i32, i32
  }
  func.func @transform_4(%arg0: i32) -> (i32, i32) {
    %c0_i32 = arith.constant 0 : i32
    %c0_i32_0 = arith.constant 0 : i32
    return %arg0, %c0_i32 : i32, i32
  }
}

module attributes {stable_mosaic.version = 11 : i64} {
  func.func @kernel(%arg0: i32, %arg1: memref<1xf32, #tpu.memory_space<smem>>, %arg2: memref<8x32xf32, #tpu.memory_space<vmem>>, %arg3: memref<8x16xf32, #tpu.memory_space<vmem>>, %arg4: memref<128x128xf32, #tpu.memory_space<vmem>>, %arg5: memref<8x1xf32, #tpu.memory_space<vmem>>) attributes {dimension_semantics = [#tpu.dimension_semantics<parallel>], iteration_bounds = array<i64: 1>, scalar_prefetch = 0 : i64, scratch_operands = 0 : i64, tpu.core_type = #tpu.core_type<tc>, window_params = [{transform_indices = @transform_0, window_bounds = array<i64: 1>}, {transform_indices = @transform_1, window_bounds = array<i64: 8, 32>}, {transform_indices = @transform_2, window_bounds = array<i64: 8, 16>}, {pipeline_mode = #tpu.pipeline_mode<synchronous>, transform_indices = @transform_3, window_bounds = array<i64: 128, 128>}, {transform_indices = @transform_4, window_bounds = array<i64: 8, 1>}]} {
    %c0 = arith.constant 0 : index
    %c0_0 = arith.constant 0 : index
    %0 = vector.load %arg2[%c0, %c0_0] : memref<8x32xf32, #tpu.memory_space<vmem>>, vector<8x32xf32>
    %c0_1 = arith.constant 0 : index
    %c0_2 = arith.constant 0 : index
    %1 = vector.load %arg3[%c0_1, %c0_2] : memref<8x16xf32, #tpu.memory_space<vmem>>, vector<8x16xf32>
    %2 = tpu.iota {dimensions = array<i32: 1>} : vector<8x80xi32>
    %c0_i32 = arith.constant 0 : i32
    %3 = vector.broadcast %c0_i32 : i32 to vector<8x80xi32>
    %4 = arith.cmpi eq, %2, %3 : vector<8x80xi32>
    %5 = arith.extui %4 : vector<8x80xi1> to vector<8x80xi32>
    %6 = arith.sitofp %5 : vector<8x80xi32> to vector<8x80xf32>
    %7 = tpu.concatenate %0, %1, %6 in 1 : vector<8x32xf32>, vector<8x16xf32>, vector<8x80xf32> -> vector<8x128xf32>
    %c0_3 = arith.constant 0 : index
    %c0_4 = arith.constant 0 : index
    %8 = vector.load %arg4[%c0_3, %c0_4] : memref<128x128xf32, #tpu.memory_space<vmem>>, vector<128x128xf32>
    %cst = arith.constant dense<0.000000e+00> : vector<8x128xf32>
    %9 = tpu.matmul %7, %8, %cst {dimension_numbers = #tpu.dot_dimension_numbers<[1], [0], [0], [1], [0, 0, 1, 1], [], []>} : vector<8x128xf32>, vector<128x128xf32>, vector<8x128xf32> -> vector<8x128xf32>
    %10 = arith.mulf %9, %7 : vector<8x128xf32>
    %cst_5 = arith.constant dense<0.000000e+00> : vector<8xf32>
    %11 = vector.multi_reduction <add>, %10, %cst_5 [1] : vector<8x128xf32> to vector<8xf32>
    %12 = vector.shape_cast %11 : vector<8xf32> to vector<8x1xf32>
    %c0_6 = arith.constant 0 : index
    %13 = memref.load %arg1[%c0_6] : memref<1xf32, #tpu.memory_space<smem>>
    %cst_7 = arith.constant 0.000000e+00 : f32
    %14 = arith.subf %cst_7, %13 : f32
    %15 = vector.broadcast %14 : f32 to vector<8x1xf32>
    %16 = arith.mulf %15, %12 : vector<8x1xf32>
    %c0_8 = arith.constant 0 : index
    %c0_9 = arith.constant 0 : index
    %17 = vector.load %arg5[%c0_8, %c0_9] : memref<8x1xf32, #tpu.memory_space<vmem>>, vector<8x1xf32>
    tpu.vector_store %arg5[%c0_8, %c0_9], %16 {strides = array<i32>} : memref<8x1xf32, #tpu.memory_space<vmem>>, vector<8x1xf32>,
    return
  }
  func.func @transform_0(%arg0: i32) -> i32 {
    %c0_i32 = arith.constant 0 : i32
    %c0_i32_0 = arith.constant 0 : i32
    return %c0_i32 : i32
  }
  func.func @transform_1(%arg0: i32) -> (i32, i32) {
    %c0_i32 = arith.constant 0 : i32
    %c0_i32_0 = arith.constant 0 : i32
    return %arg0, %c0_i32 : i32, i32
  }
  func.func @transform_2(%arg0: i32) -> (i32, i32) {
    %c0_i32 = arith.constant 0 : i32
    %c0_i32_0 = arith.constant 0 : i32
    return %arg0, %c0_i32 : i32, i32
  }
  func.func @transform_3(%arg0: i32) -> (i32, i32) {
    %c0_i32 = arith.constant 0 : i32
    %c0_i32_0 = arith.constant 0 : i32
    %c0_i32_1 = arith.constant 0 : i32
    return %c0_i32, %c0_i32_0 : i32, i32
  }
  func.func @transform_4(%arg0: i32) -> (i32, i32) {
    %c0_i32 = arith.constant 0 : i32
    %c0_i32_0 = arith.constant 0 : i32
    return %arg0, %c0_i32 : i32, i32
  }
}

</mosaic_0001>

<llo_original>
// kernel: tpu_custom_call.1
$region0: #{tpu_custom_call.1}
  #allocation0 [shape = 'u32[]', space=smem, size = 0x4, offset = 0x4, fixed_abs, tag = 'smem constant byte address 0x4 - core index']
  #allocation1 [shape = 'u32[144,128]{1,0:T(1,128)}', space=vmem, size = 0x12000, scoped, tag = 'internal scratch']
  #allocation2 [shape = 'f32[1]{0:T(128)S(6)}', space=smem, size = 0x200, scoped, tag = 'scoped memory for tpu_custom_call.1']
  %s0 = inlined_call_operand.<no memory space> [shape: f32[1], index: 0, kind: input, shape index: {}]
  %s1 = inlined_call_operand.hbm [shape: f32[8,32], index: 1, kind: input, shape index: {}]
  %s2 = inlined_call_operand.hbm [shape: f32[8,16], index: 2, kind: input, shape index: {}]
  %s3 = inlined_call_operand.hbm [shape: f32[128,128], index: 3, kind: input, shape index: {}]
  %s4 = inlined_call_operand.vmem [shape: f32[8,1], index: 4, kind: output, shape index: {}]
  %s5 = sld [smem:[#allocation0]]
  $region38: #{tpu_custom_call.1} parent=0
    _
  %s7 = ssub.s32 1, %s5
  %s8 = scalar_select 0, %s7, %s5
  %9 = sst [smem:[#allocation2]] %s0
  $region1: #{tpu_custom_call.1} parent=0
    #allocation3 [shape = 'u8[4096]{0}', space=vmem, size = 0x1000, scoped, tag = 'input window, operand 1, single buffered']
    #allocation4 [shape = 's32[1]{0}', space=sflag, size = 0x4, scoped, tag = 'scoped memory for tpu_custom_call.1']
    #allocation5 [shape = 'u8[4096]{0}', space=vmem, size = 0x1000, scoped, tag = 'input window, operand 2, single buffered']
    #allocation6 [shape = 's32[1]{0}', space=sflag, size = 0x4, scoped, tag = 'scoped memory for tpu_custom_call.1']
    #allocation7 [shape = 'u8[65536]{0}', space=vmem, size = 0x10000, scoped, tag = 'input window, operand 3, single buffered']
    %10 = vsyncpa [#allocation4], 0
    %11 = vsyncpa [#allocation6], 0
    // Predicated region
    $region2: #{tpu_custom_call.1} parent=1 // pred_check
      _
    $region3: #{tpu_custom_call.1} parent=1 // pred_check_branch
      %13 = sbr.rel (0) target = $region5
    $region4: #{tpu_custom_call.1} parent=1 // pred_region
      _
    $region5: #{tpu_custom_call.1} parent=1 // pred_fallthru
      _
    // Predicated region
    $region6: #{tpu_custom_call.1} parent=1 // pred_check
      _
    $region7: #{tpu_custom_call.1} parent=1 // pred_check_branch
      %15 = sbr.rel (0) target = $region9
    $region8: #{tpu_custom_call.1} parent=1 // pred_region
      %s17 = ssub.s32 128, 128
      %18 = vsyncadd [#allocation4], %s17
      %s20 = sshll.u32 [#allocation3], 4
      %s21 = int_to_ptr.vmem [resolvable:$true] %s20
      %23 = dma.hbm_to_vmem [thread:$0]  %s1, 128, %s21, [#allocation4]
    $region9: #{tpu_custom_call.1} parent=1 // pred_fallthru
      _
    // Predicated region
    $region10: #{tpu_custom_call.1} parent=1 // pred_check
      _
    $region11: #{tpu_custom_call.1} parent=1 // pred_check_branch
      %25 = sbr.rel (0) target = $region13
    $region12: #{tpu_custom_call.1} parent=1 // pred_region
      %s27 = ssub.s32 128, 128
      %28 = vsyncadd [#allocation6], %s27
      %s30 = sshll.u32 [#allocation5], 4
      %s31 = int_to_ptr.vmem [resolvable:$true] %s30
      %33 = dma.hbm_to_vmem [thread:$0]  %s2, 128, %s31, [#allocation6]
    $region13: #{tpu_custom_call.1} parent=1 // pred_fallthru
      _
    // Predicated region
    $region14: #{tpu_custom_call.1} parent=1 // pred_check
      _
    $region15: #{tpu_custom_call.1} parent=1 // pred_check_branch
      %35 = sbr.rel (0) target = $region17
    $region16: #{tpu_custom_call.1} parent=1 // pred_region
      %s37 = ssub.s32 2048, 2048
      %38 = vsyncadd [#allocation6], %s37
      %s39 = sshll.u32 [#allocation7], 4
      %s40 = int_to_ptr.vmem [resolvable:$true] %s39
      %45 = dma.hbm_to_vmem [thread:$0]  %s3, 2048, %s40, [#allocation6], 128, 128, 8
    $region17: #{tpu_custom_call.1} parent=1 // pred_fallthru
      _
    // Predicated region
    $region18: #{tpu_custom_call.1} parent=1 // pred_check
      _
    $region19: #{tpu_custom_call.1} parent=1 // pred_check_branch
      %47 = sbr.rel (0) target = $region21
    $region20: #{tpu_custom_call.1} parent=1 // pred_region
      %48 = dma.done [#allocation4], 128
    $region21: #{tpu_custom_call.1} parent=1 // pred_fallthru
      _
    // Predicated region
    $region22: #{tpu_custom_call.1} parent=1 // pred_check
      _
    $region23: #{tpu_custom_call.1} parent=1 // pred_check_branch
      %50 = sbr.rel (0) target = $region25
    $region24: #{tpu_custom_call.1} parent=1 // pred_region
      %51 = dma.done [#allocation6], 128
    $region25: #{tpu_custom_call.1} parent=1 // pred_fallthru
      _
    // Predicated region
    $region26: #{tpu_custom_call.1} parent=1 // pred_check
      _
    $region27: #{tpu_custom_call.1} parent=1 // pred_check_branch
      %53 = sbr.rel (0) target = $region29
    $region28: #{tpu_custom_call.1} parent=1 // pred_region
      %54 = dma.done [#allocation6], 2048
    $region29: #{tpu_custom_call.1} parent=1 // pred_fallthru
      _
    %v55 = vld [vmem:[#allocation3] sm:$0xff]
    %v56 = vld [vmem:[#allocation5] sm:$0xff]
    %v57 = vlaneseq
    %v58 = vand.u32 %v57, 127
    %vm59 = vcmp.eq.s32.totalorder %v58, 0
    %v60 = vsel %vm59, 1, 0
    %v61 = vcvt.s32.f32 %v60
    %63 = vrot.lane.b32.xlu0 %v56, 32
    %v64 = vpop.permute.xlu0 %63
    %67 = vrot.lane.b32.xlu0 %v61, 48
    %v68 = vpop.permute.xlu0 %67
    %vm70 = vcmask 261120
    %v71 = vsel %vm70, %v55, %v64
    %vm72 = vcmask 392192
    %v73 = vsel %vm72, %v71, %v68
    %v74 = vld [vmem:[#allocation7] sm:$0xff]
    %v75 = vld [vmem:[#allocation7 + $0x8] sm:$0xff]
    %v76 = vld [vmem:[#allocation7 + $0x10] sm:$0xff]
    %v77 = vld [vmem:[#allocation7 + $0x18] sm:$0xff]
    %v78 = vld [vmem:[#allocation7 + $0x20] sm:$0xff]
    %v79 = vld [vmem:[#allocation7 + $0x28] sm:$0xff]
    %v80 = vld [vmem:[#allocation7 + $0x30] sm:$0xff]
    %v81 = vld [vmem:[#allocation7 + $0x38] sm:$0xff]
    %v82 = vld [vmem:[#allocation7 + $0x40] sm:$0xff]
    %v83 = vld [vmem:[#allocation7 + $0x48] sm:$0xff]
    %v84 = vld [vmem:[#allocation7 + $0x50] sm:$0xff]
    %v85 = vld [vmem:[#allocation7 + $0x58] sm:$0xff]
    %v86 = vld [vmem:[#allocation7 + $0x60] sm:$0xff]
    %v87 = vld [vmem:[#allocation7 + $0x68] sm:$0xff]
    %v88 = vld [vmem:[#allocation7 + $0x70] sm:$0xff]
    %v89 = vld [vmem:[#allocation7 + $0x78] sm:$0xff]
    %90 = vmatprep.subr.mxu0 0.0
    %91 = vmatpush1.msra.mxu0 %v74
    %92 = vmatprep.subr.mxu0 0.0
    %93 = vmatpush1.msra.mxu0 %v75
    %94 = vmatprep.subr.mxu0 0.0
    %95 = vmatpush1.msra.mxu0 %v76
    %96 = vmatprep.subr.mxu0 0.0
    %97 = vmatpush1.msra.mxu0 %v77
    %98 = vmatprep.subr.mxu0 0.0
    %99 = vmatpush1.msra.mxu0 %v78
    %100 = vmatprep.subr.mxu0 0.0
    %101 = vmatpush1.msra.mxu0 %v79
    %102 = vmatprep.subr.mxu0 0.0
    %103 = vmatpush1.msra.mxu0 %v80
    %104 = vmatprep.subr.mxu0 0.0
    %105 = vmatpush1.msra.mxu0 %v81
    %106 = vmatprep.subr.mxu0 0.0
    %107 = vmatpush1.msra.mxu0 %v82
    %108 = vmatprep.subr.mxu0 0.0
    %109 = vmatpush1.msra.mxu0 %v83
    %110 = vmatprep.subr.mxu0 0.0
    %111 = vmatpush1.msra.mxu0 %v84
    %112 = vmatprep.subr.mxu0 0.0
    %113 = vmatpush1.msra.mxu0 %v85
    %114 = vmatprep.subr.mxu0 0.0
    %115 = vmatpush1.msra.mxu0 %v86
    %116 = vmatprep.subr.mxu0 0.0
    %117 = vmatpush1.msra.mxu0 %v87
    %118 = vmatprep.subr.mxu0 0.0
    %119 = vmatpush1.msra.mxu0 %v88
    %120 = vmatprep.subr.mxu0 0.0
    %121 = vmatpush1.msra.mxu0 %v89
    %122 = vmatprep.subr.mxu0 0.0
    %123 = vmatpush1.msra.mxu0 0.0
    %124 = vmatprep.subr.mxu0 0.0
    %125 = vmatpush1.msra.mxu0 0.0
    %126 = vmatprep.subr.mxu0 0.0
    %127 = vmatpush1.msra.mxu0 0.0
    %128 = vmatprep.subr.mxu0 0.0
    %129 = vmatpush1.msra.mxu0 0.0
    %130 = vmatprep.subr.mxu0 0.0
    %131 = vmatpush1.msra.mxu0 0.0
    %132 = vmatprep.subr.mxu0 0.0
    %133 = vmatpush1.msra.mxu0 0.0
    %134 = vmatprep.subr.mxu0 0.0
    %135 = vmatpush1.msra.mxu0 0.0
    %136 = vmatprep.subr.mxu0 0.0
    %137 = vmatpush1.msra.mxu0 0.0
    %138 = vmatprep.subr.mxu0 0.0
    %139 = vmatpush1.msra.mxu0 0.0
    %140 = vmatprep.subr.mxu0 0.0
    %141 = vmatpush1.msra.mxu0 0.0
    %142 = vmatprep.subr.mxu0 0.0
    %143 = vmatpush1.msra.mxu0 0.0
    %144 = vmatprep.subr.mxu0 0.0
    %145 = vmatpush1.msra.mxu0 0.0
    %146 = vmatprep.subr.mxu0 0.0
    %147 = vmatpush1.msra.mxu0 0.0
    %148 = vmatprep.subr.mxu0 0.0
    %149 = vmatpush1.msra.mxu0 0.0
    %150 = vmatprep.subr.mxu0 0.0
    %151 = vmatpush1.msra.mxu0 0.0
    %152 = vmatprep.subr.mxu0 0.0
    %153 = vmatpush1.msra.mxu0 0.0
    %154 = vmatprep.mubr.f32.mxu0 0.0
    %155 = vmatmul.mubr.f32.gmra.mrb[0].mxu0 %v73
    %v156 = vpop.f32.mrb[0].mxu0
    %v157 = vadd.f32 0.0, %v156
    %v158 = vpop.f32.mrb[0].mxu0
    %159 = vdwg.mxu0
    %v160 = vmul.f32 %v157, %v73
    %161 = vadd.xlane.f32.xlu0 %v160
    %v162 = vpop.xlane.xlu0 %161
    %s163 = sld [smem:[#allocation2]]
    %s164 = ssub.f32 0.0, %s163
    %v165 = vstv %s164
    %v166 = vmul.f32 %v165, %v162
    %vm167 = vcmask 7168
    %168 = vst.msk [vmem:[%s4] sm:$0xff] %vm167, %v166
    // Predicated region
    $region30: #{tpu_custom_call.1} parent=1 // pred_check
      _
    $region31: #{tpu_custom_call.1} parent=1 // pred_check_branch
      %170 = sbr.rel (0) target = $region33
    $region32: #{tpu_custom_call.1} parent=1 // pred_region
      _
    $region33: #{tpu_custom_call.1} parent=1 // pred_fallthru
      _
    // Predicated region
    $region34: #{tpu_custom_call.1} parent=1 // pred_check
      _
    $region35: #{tpu_custom_call.1} parent=1 // pred_check_branch
      %172 = sbr.rel (0) target = $region37
    $region36: #{tpu_custom_call.1} parent=1 // pred_region
      _
    $region37: #{tpu_custom_call.1} parent=1 // pred_fallthru
      _
    %173 = vsyncpa [#allocation4], 1
    %174 = vsyncpa [#allocation6], 1

// kernel: tpu_custom_call.1
$region0: #{tpu_custom_call.1}
  #allocation0 [shape = 'u32[]', space=smem, size = 0x4, offset = 0x4, fixed_abs, tag = 'smem constant byte address 0x4 - core index']
  #allocation1 [shape = 'u32[144,128]{1,0:T(1,128)}', space=vmem, size = 0x12000, scoped, tag = 'internal scratch']
  #allocation2 [shape = 'f32[1]{0:T(128)S(6)}', space=smem, size = 0x200, scoped, tag = 'scoped memory for tpu_custom_call.1']
  %s0 = inlined_call_operand.<no memory space> [shape: f32[1], index: 0, kind: input, shape index: {}]
  %s1 = inlined_call_operand.hbm [shape: f32[8,32], index: 1, kind: input, shape index: {}]
  %s2 = inlined_call_operand.hbm [shape: f32[8,16], index: 2, kind: input, shape index: {}]
  %s3 = inlined_call_operand.hbm [shape: f32[128,128], index: 3, kind: input, shape index: {}]
  %s4 = inlined_call_operand.vmem [shape: f32[8,1], index: 4, kind: output, shape index: {}]
  %s5 = sld [smem:[#allocation0]]
  $region38: #{tpu_custom_call.1} parent=0
    _
  %s7 = ssub.s32 1, %s5
  %s8 = scalar_select 0, %s7, %s5
  %9 = sst [smem:[#allocation2]] %s0
  $region1: #{tpu_custom_call.1} parent=0
    #allocation3 [shape = 'u8[4096]{0}', space=vmem, size = 0x1000, scoped, tag = 'input window, operand 1, single buffered']
    #allocation4 [shape = 's32[1]{0}', space=sflag, size = 0x4, scoped, tag = 'scoped memory for tpu_custom_call.1']
    #allocation5 [shape = 'u8[4096]{0}', space=vmem, size = 0x1000, scoped, tag = 'input window, operand 2, single buffered']
    #allocation6 [shape = 's32[1]{0}', space=sflag, size = 0x4, scoped, tag = 'scoped memory for tpu_custom_call.1']
    #allocation7 [shape = 'u8[65536]{0}', space=vmem, size = 0x10000, scoped, tag = 'input window, operand 3, single buffered']
    %10 = vsyncpa [#allocation4], 0
    %11 = vsyncpa [#allocation6], 0
    // Predicated region
    $region2: #{tpu_custom_call.1} parent=1 // pred_check
      _
    $region3: #{tpu_custom_call.1} parent=1 // pred_check_branch
      %13 = sbr.rel (0) target = $region5
    $region4: #{tpu_custom_call.1} parent=1 // pred_region
      _
    $region5: #{tpu_custom_call.1} parent=1 // pred_fallthru
      _
    // Predicated region
    $region6: #{tpu_custom_call.1} parent=1 // pred_check
      _
    $region7: #{tpu_custom_call.1} parent=1 // pred_check_branch
      %15 = sbr.rel (0) target = $region9
    $region8: #{tpu_custom_call.1} parent=1 // pred_region
      %s17 = ssub.s32 128, 128
      %18 = vsyncadd [#allocation4], %s17
      %s20 = sshll.u32 [#allocation3], 4
      %s21 = int_to_ptr.vmem [resolvable:$true] %s20
      %23 = dma.hbm_to_vmem [thread:$0]  %s1, 128, %s21, [#allocation4]
    $region9: #{tpu_custom_call.1} parent=1 // pred_fallthru
      _
    // Predicated region
    $region10: #{tpu_custom_call.1} parent=1 // pred_check
      _
    $region11: #{tpu_custom_call.1} parent=1 // pred_check_branch
      %25 = sbr.rel (0) target = $region13
    $region12: #{tpu_custom_call.1} parent=1 // pred_region
      %s27 = ssub.s32 128, 128
      %28 = vsyncadd [#allocation6], %s27
      %s30 = sshll.u32 [#allocation5], 4
      %s31 = int_to_ptr.vmem [resolvable:$true] %s30
      %33 = dma.hbm_to_vmem [thread:$0]  %s2, 128, %s31, [#allocation6]
    $region13: #{tpu_custom_call.1} parent=1 // pred_fallthru
      _
    // Predicated region
    $region14: #{tpu_custom_call.1} parent=1 // pred_check
      _
    $region15: #{tpu_custom_call.1} parent=1 // pred_check_branch
      %35 = sbr.rel (0) target = $region17
    $region16: #{tpu_custom_call.1} parent=1 // pred_region
      %s37 = ssub.s32 2048, 2048
      %38 = vsyncadd [#allocation6], %s37
      %s39 = sshll.u32 [#allocation7], 4
      %s40 = int_to_ptr.vmem [resolvable:$true] %s39
      %45 = dma.hbm_to_vmem [thread:$0]  %s3, 2048, %s40, [#allocation6], 128, 128, 8
    $region17: #{tpu_custom_call.1} parent=1 // pred_fallthru
      _
    // Predicated region
    $region18: #{tpu_custom_call.1} parent=1 // pred_check
      _
    $region19: #{tpu_custom_call.1} parent=1 // pred_check_branch
      %47 = sbr.rel (0) target = $region21
    $region20: #{tpu_custom_call.1} parent=1 // pred_region
      %48 = dma.done [#allocation4], 128
    $region21: #{tpu_custom_call.1} parent=1 // pred_fallthru
      _
    // Predicated region
    $region22: #{tpu_custom_call.1} parent=1 // pred_check
      _
    $region23: #{tpu_custom_call.1} parent=1 // pred_check_branch
      %50 = sbr.rel (0) target = $region25
    $region24: #{tpu_custom_call.1} parent=1 // pred_region
      %51 = dma.done [#allocation6], 128
    $region25: #{tpu_custom_call.1} parent=1 // pred_fallthru
      _
    // Predicated region
    $region26: #{tpu_custom_call.1} parent=1 // pred_check
      _
    $region27: #{tpu_custom_call.1} parent=1 // pred_check_branch
      %53 = sbr.rel (0) target = $region29
    $region28: #{tpu_custom_call.1} parent=1 // pred_region
      %54 = dma.done [#allocation6], 2048
    $region29: #{tpu_custom_call.1} parent=1 // pred_fallthru
      _
    %v55 = vld [vmem:[#allocation3] sm:$0xff]
    %v56 = vld [vmem:[#allocation5] sm:$0xff]
    %v57 = vlaneseq
    %v58 = vand.u32 %v57, 127
    %vm59 = vcmp.eq.s32.totalorder %v58, 0
    %v60 = vsel %vm59, 1, 0
    %v61 = vcvt.s32.f32 %v60
    %63 = vrot.lane.b32.xlu0 %v56, 32
    %v64 = vpop.permute.xlu0 %63
    %67 = vrot.lane.b32.xlu0 %v61, 48
    %v68 = vpop.permute.xlu0 %67
    %vm70 = vcmask 261120
    %v71 = vsel %vm70, %v55, %v64
    %vm72 = vcmask 392192
    %v73 = vsel %vm72, %v71, %v68
    %v74 = vld [vmem:[#allocation7] sm:$0xff]
    %v75 = vld [vmem:[#allocation7 + $0x8] sm:$0xff]
    %v76 = vld [vmem:[#allocation7 + $0x10] sm:$0xff]
    %v77 = vld [vmem:[#allocation7 + $0x18] sm:$0xff]
    %v78 = vld [vmem:[#allocation7 + $0x20] sm:$0xff]
    %v79 = vld [vmem:[#allocation7 + $0x28] sm:$0xff]
    %v80 = vld [vmem:[#allocation7 + $0x30] sm:$0xff]
    %v81 = vld [vmem:[#allocation7 + $0x38] sm:$0xff]
    %v82 = vld [vmem:[#allocation7 + $0x40] sm:$0xff]
    %v83 = vld [vmem:[#allocation7 + $0x48] sm:$0xff]
    %v84 = vld [vmem:[#allocation7 + $0x50] sm:$0xff]
    %v85 = vld [vmem:[#allocation7 + $0x58] sm:$0xff]
    %v86 = vld [vmem:[#allocation7 + $0x60] sm:$0xff]
    %v87 = vld [vmem:[#allocation7 + $0x68] sm:$0xff]
    %v88 = vld [vmem:[#allocation7 + $0x70] sm:$0xff]
    %v89 = vld [vmem:[#allocation7 + $0x78] sm:$0xff]
    %90 = vmatprep.subr.mxu0 0.0
    %91 = vmatpush1.msra.mxu0 %v74
    %92 = vmatprep.subr.mxu0 0.0
    %93 = vmatpush1.msra.mxu0 %v75
    %94 = vmatprep.subr.mxu0 0.0
    %95 = vmatpush1.msra.mxu0 %v76
    %96 = vmatprep.subr.mxu0 0.0
    %97 = vmatpush1.msra.mxu0 %v77
    %98 = vmatprep.subr.mxu0 0.0
    %99 = vmatpush1.msra.mxu0 %v78
    %100 = vmatprep.subr.mxu0 0.0
    %101 = vmatpush1.msra.mxu0 %v79
    %102 = vmatprep.subr.mxu0 0.0
    %103 = vmatpush1.msra.mxu0 %v80
    %104 = vmatprep.subr.mxu0 0.0
    %105 = vmatpush1.msra.mxu0 %v81
    %106 = vmatprep.subr.mxu0 0.0
    %107 = vmatpush1.msra.mxu0 %v82
    %108 = vmatprep.subr.mxu0 0.0
    %109 = vmatpush1.msra.mxu0 %v83
    %110 = vmatprep.subr.mxu0 0.0
    %111 = vmatpush1.msra.mxu0 %v84
    %112 = vmatprep.subr.mxu0 0.0
    %113 = vmatpush1.msra.mxu0 %v85
    %114 = vmatprep.subr.mxu0 0.0
    %115 = vmatpush1.msra.mxu0 %v86
    %116 = vmatprep.subr.mxu0 0.0
    %117 = vmatpush1.msra.mxu0 %v87
    %118 = vmatprep.subr.mxu0 0.0
    %119 = vmatpush1.msra.mxu0 %v88
    %120 = vmatprep.subr.mxu0 0.0
    %121 = vmatpush1.msra.mxu0 %v89
    %122 = vmatprep.subr.mxu0 0.0
    %123 = vmatpush1.msra.mxu0 0.0
    %124 = vmatprep.subr.mxu0 0.0
    %125 = vmatpush1.msra.mxu0 0.0
    %126 = vmatprep.subr.mxu0 0.0
    %127 = vmatpush1.msra.mxu0 0.0
    %128 = vmatprep.subr.mxu0 0.0
    %129 = vmatpush1.msra.mxu0 0.0
    %130 = vmatprep.subr.mxu0 0.0
    %131 = vmatpush1.msra.mxu0 0.0
    %132 = vmatprep.subr.mxu0 0.0
    %133 = vmatpush1.msra.mxu0 0.0
    %134 = vmatprep.subr.mxu0 0.0
    %135 = vmatpush1.msra.mxu0 0.0
    %136 = vmatprep.subr.mxu0 0.0
    %137 = vmatpush1.msra.mxu0 0.0
    %138 = vmatprep.subr.mxu0 0.0
    %139 = vmatpush1.msra.mxu0 0.0
    %140 = vmatprep.subr.mxu0 0.0
    %141 = vmatpush1.msra.mxu0 0.0
    %142 = vmatprep.subr.mxu0 0.0
    %143 = vmatpush1.msra.mxu0 0.0
    %144 = vmatprep.subr.mxu0 0.0
    %145 = vmatpush1.msra.mxu0 0.0
    %146 = vmatprep.subr.mxu0 0.0
    %147 = vmatpush1.msra.mxu0 0.0
    %148 = vmatprep.subr.mxu0 0.0
    %149 = vmatpush1.msra.mxu0 0.0
    %150 = vmatprep.subr.mxu0 0.0
    %151 = vmatpush1.msra.mxu0 0.0
    %152 = vmatprep.subr.mxu0 0.0
    %153 = vmatpush1.msra.mxu0 0.0
    %154 = vmatprep.mubr.f32.mxu0 0.0
    %155 = vmatmul.mubr.f32.gmra.mrb[0].mxu0 %v73
    %v156 = vpop.f32.mrb[0].mxu0
    %v157 = vadd.f32 0.0, %v156
    %v158 = vpop.f32.mrb[0].mxu0
    %159 = vdwg.mxu0
    %v160 = vmul.f32 %v157, %v73
    %161 = vadd.xlane.f32.xlu0 %v160
    %v162 = vpop.xlane.xlu0 %161
    %s163 = sld [smem:[#allocation2]]
    %s164 = ssub.f32 0.0, %s163
    %v165 = vstv %s164
    %v166 = vmul.f32 %v165, %v162
    %vm167 = vcmask 7168
    %168 = vst.msk [vmem:[%s4] sm:$0xff] %vm167, %v166
    // Predicated region
    $region30: #{tpu_custom_call.1} parent=1 // pred_check
      _
    $region31: #{tpu_custom_call.1} parent=1 // pred_check_branch
      %170 = sbr.rel (0) target = $region33
    $region32: #{tpu_custom_call.1} parent=1 // pred_region
      _
    $region33: #{tpu_custom_call.1} parent=1 // pred_fallthru
      _
    // Predicated region
    $region34: #{tpu_custom_call.1} parent=1 // pred_check
      _
    $region35: #{tpu_custom_call.1} parent=1 // pred_check_branch
      %172 = sbr.rel (0) target = $region37
    $region36: #{tpu_custom_call.1} parent=1 // pred_region
      _
    $region37: #{tpu_custom_call.1} parent=1 // pred_fallthru
      _
    %173 = vsyncpa [#allocation4], 1
    %174 = vsyncpa [#allocation6], 1

</llo_original>
